<compile_context>
chip_gen: v6e
topology: v6e:2x2x1
jax: 0.10.0
libtpu: 0.0.40
codegen_flags: <defaults>
</compile_context>

<pallas_src>
import math
import jax
import jax.numpy as jnp
from jax.experimental import pallas as pl
from jax.experimental.pallas import tpu as pltpu


# ---------------------------------------------------------------------------
# Kernel bodies
# ---------------------------------------------------------------------------
def _geb_update(x, vp1, vec2, wu1x_ref, wu1v_ref, bu1_ref,
                wu2x_ref, wu2v_ref, bu2x_ref, bu2v_ref, xo_ref, vo_ref):
    """Shared tail: norm, update_net, gating. vp1:(3,tn,H) f32, vec2:(3,tn,O) f32."""
    f32 = jnp.float32

    # L2 norm over the spatial axis: pure VPU adds over three slabs + EUP sqrt.
    ssq = jnp.sum(vp1 * vp1, axis=0)                              # (tn, H) f32
    vec1 = jnp.sqrt(ssq)
    # TODO(synk): no epsilon under the sqrt (matches the PyTorch forward); a
    # backward pass would need sqrt(ssq + eps) to avoid NaN grads at 0.

    # update_net[0]: [x, vec1] @ Wu1 + bu1  (host-split weights, no concat)
    h = (jnp.dot(x, wu1x_ref[...], preferred_element_type=f32)
         + jnp.dot(vec1.astype(x.dtype), wu1v_ref[...], preferred_element_type=f32)
         + bu1_ref[...])                                          # (tn, I) f32
    h = h * jax.nn.sigmoid(h)                                     # SiLU in f32

    # update_net[2]: split output heads (host-split weights)
    hc = h.astype(wu2x_ref.dtype)
    x_out = jnp.dot(hc, wu2x_ref[...], preferred_element_type=f32) + bu2x_ref[...]
    v_gate = jnp.dot(hc, wu2v_ref[...], preferred_element_type=f32) + bu2v_ref[...]

    xo_ref[...] = x_out.astype(xo_ref.dtype)                      # (tn, O)
    # single lane-dense store of all three spatial components
    vo_ref[...] = (vec2 * v_gate[None]).astype(vo_ref.dtype)      # (3, tn, O)


def geb_kernel_fused(x_ref, v_ref, w12_ref, wu1x_ref, wu1v_ref, bu1_ref,
                     wu2x_ref, wu2v_ref, bu2x_ref, bu2v_ref, xo_ref, vo_ref):
    """Fused [W1|W2] variant — requires H % 128 == 0 (lane-aligned slices)."""
    tn, H = x_ref.shape
    O = xo_ref.shape[-1]
    # (3, tn, H) -> (3*tn, H): leading-axis merge, layout-free (tn % 16 == 0).
    v3 = v_ref[...].reshape(3 * tn, H)
    p = jnp.dot(v3, w12_ref[...], preferred_element_type=jnp.float32)  # (3tn, H+O)
    vp1 = p[:, :H].reshape(3, tn, H)                                    # lane-aligned
    vec2 = p[:, H:].reshape(3, tn, O)
    _geb_update(x_ref[...], vp1, vec2, wu1x_ref, wu1v_ref, bu1_ref,
                wu2x_ref, wu2v_ref, bu2x_ref, bu2v_ref, xo_ref, vo_ref)


def geb_kernel_split(x_ref, v_ref, w1_ref, w2_ref, wu1x_ref, wu1v_ref, bu1_ref,
                     wu2x_ref, wu2v_ref, bu2x_ref, bu2v_ref, xo_ref, vo_ref):
    """Split-weight variant — safe for any H/O (no lane-unaligned result slices)."""
    tn, H = x_ref.shape
    O = xo_ref.shape[-1]
    v3 = v_ref[...].reshape(3 * tn, H)
    vp1 = jnp.dot(v3, w1_ref[...], preferred_element_type=jnp.float32).reshape(3, tn, H)
    vec2 = jnp.dot(v3, w2_ref[...], preferred_element_type=jnp.float32).reshape(3, tn, O)
    _geb_update(x_ref[...], vp1, vec2, wu1x_ref, wu1v_ref, bu1_ref,
                wu2x_ref, wu2v_ref, bu2x_ref, bu2v_ref, xo_ref, vo_ref)


# ---------------------------------------------------------------------------
# Host-side helpers
# ---------------------------------------------------------------------------
def _round_up(a, b):
    return -(-a // b) * b


def _vmem_bytes(tn, H, I, O, act_bytes, out_bytes, w_bytes):
    """Rough per-call VMEM footprint (inputs/outputs/weights double-buffered)."""
    acts_in = tn * 4 * H * act_bytes                # x:(tn,H) + v:(3,tn,H)
    acts_out = tn * 4 * O * out_bytes               # xo:(tn,O) + vo:(3,tn,O)
    weights = (H * (H + O) + 2 * H * I + 2 * I * O) * w_bytes + (I + 2 * O) * 4
    scratch = tn * (3 * (H + O) + H + I + 3 * O) * 4  # f32 intermediates
    return 2 * (acts_in + acts_out + weights) + scratch


def _pick_tile(N, H, I, O, act_bytes, out_bytes, w_bytes, budget_bytes):
    tn = min(1024, _round_up(max(N, 1), 16))
    while tn > 16 and _vmem_bytes(tn, H, I, O, act_bytes, out_bytes,
                                  w_bytes) > budget_bytes:
        tn = _round_up(tn // 2, 16)
    return max(tn, 16)


def _vmem_caps():
    """Generation-aware VMEM budget / cap (v7x: 64 MiB/TC, v5e/v6e: 128 MiB)."""
    try:
        info = pltpu.get_tpu_info()
        phys = int(getattr(info, "vmem_capacity_bytes", 128 * 1024 * 1024))
    except Exception:
        phys = 128 * 1024 * 1024
    return int(0.55 * phys), int(0.75 * phys)


def prepare_params(params, compute_dtype=jnp.float32):
    """One-time weight packing (call at init; avoids per-forward HBM copies)."""
    w1, w2, wu1, bu1, wu2, bu2 = params
    H = w1.shape[0]
    O = w2.shape[1]
    I = wu1.shape[1]
    assert w1.shape == (H, H) and w2.shape == (H, O)
    assert wu1.shape == (2 * H, I) and wu2.shape == (I, 2 * O)
    bu1 = jnp.asarray(bu1).reshape(1, I).astype(jnp.float32)    # biases stay f32
    bu2 = jnp.asarray(bu2).reshape(1, 2 * O).astype(jnp.float32)
    fuse_w12 = (H % 128 == 0)                                    # lane-aligned slices only
    if fuse_w12:
        vw = (jnp.concatenate([w1, w2], axis=1).astype(compute_dtype),)   # (H, H+O)
    else:
        vw = (w1.astype(compute_dtype), w2.astype(compute_dtype))
    return dict(
        fuse_w12=fuse_w12,
        vw=vw,
        wu1x=wu1[:H, :].astype(compute_dtype),   # (H, I)
        wu1v=wu1[H:, :].astype(compute_dtype),   # (H, I)
        bu1=bu1,                                 # (1, I)
        wu2x=wu2[:, :O].astype(compute_dtype),   # (I, O)
        wu2v=wu2[:, O:].astype(compute_dtype),   # (I, O)
        bu2x=bu2[:, :O],                         # (1, O)
        bu2v=bu2[:, O:],                         # (1, O)
        H=H, O=O, I=I,
        compute_dtype=jnp.dtype(compute_dtype),
    )


# ---------------------------------------------------------------------------
# Wrapper
# ---------------------------------------------------------------------------
def gated_equivariant_block(x, v, params, *, tn=None, compute_dtype=None,
                            vmem_budget_bytes=None, vmem_cap_bytes=None):
    N, H = x.shape
    assert v.shape == (N, 3, H)
    out_dtype = x.dtype

    if isinstance(params, dict) and "vw" in params:
        prepared = params
    else:
        # TODO(synk): for training/inference loops call prepare_params() once
        # at init instead of re-packing weights on every forward call.
        if compute_dtype is None:
            compute_dtype = x.dtype
        prepared = prepare_params(params, compute_dtype)

    assert prepared["H"] == H
    O, I = prepared["O"], prepared["I"]
    compute_dtype = prepared["compute_dtype"]
    fuse = prepared["fuse_w12"]

    budget_default, cap_default = _vmem_caps()
    if vmem_budget_bytes is None:
        vmem_budget_bytes = budget_default
    if vmem_cap_bytes is None:
        vmem_cap_bytes = cap_default

    act_bytes = jnp.dtype(compute_dtype).itemsize
    out_bytes = jnp.dtype(out_dtype).itemsize
    if tn is None:
        tn = _pick_tile(N, H, I, O, act_bytes, out_bytes, act_bytes,
                        vmem_budget_bytes)
        # keep >= 2 grid steps when there is enough work so both v7x
        # TensorCores get a share under dimension_semantics=("parallel",)
        if N > 64 and _round_up(N, tn) // tn < 2:
            tn = max(16, _round_up(-(-N // 2), 16))
    tn = max(16, _round_up(int(tn), 16))       # sublane-friendly (f32 and bf16)

    Np = _round_up(N, tn)
    xc = x.astype(compute_dtype)
    # (N,3,H) -> (3,N,H): spatial axis leads so the kernel can fuse the three
    # spatial matmuls into one (3*tn, H) matmul and store v_out lane-dense.
    vc = jnp.transpose(v, (1, 0, 2)).astype(compute_dtype)
    if Np != N:
        xc = jnp.pad(xc, ((0, Np - N), (0, 0)))
        vc = jnp.pad(vc, ((0, 0), (0, Np - N), (0, 0)))

    grid = (Np // tn,)
    const = lambda shape: pl.BlockSpec(shape, lambda i: tuple(0 for _ in shape))
    # TODO(synk): once single-buffering of constant operands is exercised on
    # the target jax version, mark the weight specs pipeline_mode=pl.Buffered(1)
    # to avoid a duplicated weight copy in VMEM (matters most on v7x, 64 MiB).

    vmem_limit = int(min(max(2 * _vmem_bytes(tn, H, I, O, act_bytes,
                                             out_bytes, act_bytes),
                             16 * 1024 * 1024),
                         vmem_cap_bytes))

    kernel = geb_kernel_fused if fuse else geb_kernel_split
    vw_specs = [const(w.shape) for w in prepared["vw"]]

    in_specs = (
        [pl.BlockSpec((tn, H), lambda i: (i, 0)),            # x
         pl.BlockSpec((3, tn, H), lambda i: (0, i, 0))]      # v (spatial-leading)
        + vw_specs                                           # W12  or  W1, W2
        + [const((H, I)),                                    # Wu1x
           const((H, I)),                                    # Wu1v
           const((1, I)),                                    # bu1
           const((I, O)),                                    # Wu2x
           const((I, O)),                                    # Wu2v
           const((1, O)),                                    # bu2x
           const((1, O))]                                    # bu2v
    )

    xo, vo = pl.pallas_call(
        kernel,
        out_shape=(jax.ShapeDtypeStruct((Np, O), out_dtype),
                   jax.ShapeDtypeStruct((3, Np, O), out_dtype)),
        grid_spec=pltpu.PrefetchScalarGridSpec(
            num_scalar_prefetch=0,
            grid=grid,
            in_specs=in_specs,
            out_specs=[pl.BlockSpec((tn, O), lambda i: (i, 0)),       # x_out
                       pl.BlockSpec((3, tn, O), lambda i: (0, i, 0))],  # v_out
        ),
        compiler_params=pltpu.CompilerParams(
            dimension_semantics=("parallel",),
            vmem_limit_bytes=vmem_limit),
    )(xc, vc, *prepared["vw"], prepared["wu1x"], prepared["wu1v"],
      prepared["bu1"], prepared["wu2x"], prepared["wu2v"],
      prepared["bu2x"], prepared["bu2v"])

    x_out = xo[:N]
    v_out = jnp.transpose(vo[:, :N, :], (1, 0, 2))     # (3, N, O) -> (N, 3, O)
    return x_out, v_out


# ---------------------------------------------------------------------------
# Parameter init (matches the PyTorch reset_parameters; weights stored
# pre-transposed as (in_features, out_features))
# ---------------------------------------------------------------------------
def xavier_uniform(key, fan_in, fan_out, dtype=jnp.float32):
    limit = math.sqrt(6.0 / (fan_in + fan_out))
    return jax.random.uniform(key, (fan_in, fan_out), dtype, -limit, limit)


def init_params(key, hidden_channels, out_channels, intermediate_channels=None):
    if intermediate_channels is None:
        intermediate_channels = hidden_channels
    k1, k2, k3, k4 = jax.random.split(key, 4)
    H, O, I = hidden_channels, out_channels, intermediate_channels
    w1 = xavier_uniform(k1, H, H)          # vec1_proj (no bias)
    w2 = xavier_uniform(k2, H, O)          # vec2_proj (no bias)
    wu1 = xavier_uniform(k3, 2 * H, I)     # update_net[0]
    bu1 = jnp.zeros((1, I), jnp.float32)
    wu2 = xavier_uniform(k4, I, 2 * O)     # update_net[2]
    bu2 = jnp.zeros((1, 2 * O), jnp.float32)
    return (w1, w2, wu1, bu1, wu2, bu2)


def reference(x, v, params):
    # Pure-JAX reference mirroring the PyTorch forward.
    w1, w2, wu1, bu1, wu2, bu2 = params
    O = w2.shape[1]
    vec1 = jnp.linalg.norm(jnp.einsum('nkh,hj->nkj', v, w1), axis=-2)
    vec2 = jnp.einsum('nkh,ho->nko', v, w2)
    xc = jnp.concatenate([x, vec1], axis=-1)
    h = xc @ wu1 + bu1
    h = h * jax.nn.sigmoid(h)
    out = h @ wu2 + bu2
    x_out, v_gate = out[:, :O], out[:, O:]
    return x_out, v_gate[:, None, :] * vec2


if __name__ == "__main__":
    key = jax.random.PRNGKey(0)
    kx, kv, kp = jax.random.split(key, 3)

    # --- f32 correctness, small H (split-weight path, H % 128 != 0) --------
    N, H, O = 8, 32, 16
    x = jax.random.normal(kx, (N, H), jnp.float32)
    v = jax.random.normal(kv, (N, 3, H), jnp.float32)
    params = init_params(kp, H, O)
    prepared = prepare_params(params, jnp.float32)   # one-time weight packing

    x_out, v_out = gated_equivariant_block(x, v, prepared)
    jax.block_until_ready((x_out, v_out))
    x_ref, v_ref = reference(x, v, params)
    assert x_out.shape == (N, O) and v_out.shape == (N, 3, O)
    assert jnp.allclose(x_out, x_ref, atol=1e-5, rtol=1e-5)
    assert jnp.allclose(v_out, v_ref, atol=1e-5, rtol=1e-5)

    # --- multi-step grid path (N not a multiple of the row tile) -----------
    N2 = 40
    x2 = jax.random.normal(kx, (N2, H), jnp.float32)
    v2 = jax.random.normal(kv, (N2, 3, H), jnp.float32)
    x2_out, v2_out = gated_equivariant_block(x2, v2, prepared, tn=16)
    jax.block_until_ready((x2_out, v2_out))
    x2_ref, v2_ref = reference(x2, v2, params)
    assert jnp.allclose(x2_out, x2_ref, atol=1e-5, rtol=1e-5)
    assert jnp.allclose(v2_out, v2_ref, atol=1e-5, rtol=1e-5)

    # --- fused [W1|W2] path (H % 128 == 0) ----------------------------------
    N3, H3, O3 = 16, 128, 64
    kx3, kv3, kp3 = jax.random.split(jax.random.PRNGKey(1), 3)
    x3 = jax.random.normal(kx3, (N3, H3), jnp.float32)
    v3 = jax.random.normal(kv3, (N3, 3, H3), jnp.float32)
    params3 = init_params(kp3, H3, O3)
    x3_out, v3_out = gated_equivariant_block(x3, v3, params3)
    jax.block_until_ready((x3_out, v3_out))
    x3_ref, v3_ref = reference(x3, v3, params3)
    assert jnp.allclose(x3_out, x3_ref, atol=2e-2, rtol=2e-2)
    assert jnp.allclose(v3_out, v3_ref, atol=2e-2, rtol=2e-2)

    # --- bf16 compute path: f32 accumulation inside; check vs f32 reference -
    prepared_bf16 = prepare_params(params, jnp.bfloat16)
    xb_out, vb_out = gated_equivariant_block(x, v, prepared_bf16)
    jax.block_until_ready((xb_out, vb_out))
    assert bool(jnp.all(jnp.isfinite(xb_out))) and bool(jnp.all(jnp.isfinite(vb_out)))
    assert jnp.allclose(xb_out, x_ref, atol=1e-1, rtol=5e-2)
    assert jnp.allclose(vb_out, v_ref, atol=1e-1, rtol=5e-2)

    print("KERNEL_OK")
</pallas_src>

<mosaic_0001>
module attributes {stable_mosaic.version = 11 : i64} {
  func.func @geb_kernel_split(%arg0: i32, %arg1: memref<16x32xf32, #tpu.memory_space<vmem>>, %arg2: memref<3x16x32xf32, #tpu.memory_space<vmem>>, %arg3: memref<32x32xf32, #tpu.memory_space<vmem>>, %arg4: memref<32x16xf32, #tpu.memory_space<vmem>>, %arg5: memref<32x32xf32, #tpu.memory_space<vmem>>, %arg6: memref<32x32xf32, #tpu.memory_space<vmem>>, %arg7: memref<1x32xf32, #tpu.memory_space<vmem>>, %arg8: memref<32x16xf32, #tpu.memory_space<vmem>>, %arg9: memref<32x16xf32, #tpu.memory_space<vmem>>, %arg10: memref<1x16xf32, #tpu.memory_space<vmem>>, %arg11: memref<1x16xf32, #tpu.memory_space<vmem>>, %arg12: memref<16x16xf32, #tpu.memory_space<vmem>>, %arg13: memref<3x16x16xf32, #tpu.memory_space<vmem>>) attributes {dimension_semantics = [#tpu.dimension_semantics<parallel>], iteration_bounds = array<i64: 1>, scalar_prefetch = 0 : i64, scratch_operands = 0 : i64, tpu.core_type = #tpu.core_type<tc>, window_params = [{transform_indices = @transform_0, window_bounds = array<i64: 16, 32>}, {transform_indices = @transform_1, window_bounds = array<i64: 3, 16, 32>}, {pipeline_mode = #tpu.pipeline_mode<synchronous>, transform_indices = @transform_2, window_bounds = array<i64: 32, 32>}, {pipeline_mode = #tpu.pipeline_mode<synchronous>, transform_indices = @transform_3, window_bounds = array<i64: 32, 16>}, {pipeline_mode = #tpu.pipeline_mode<synchronous>, transform_indices = @transform_4, window_bounds = array<i64: 32, 32>}, {pipeline_mode = #tpu.pipeline_mode<synchronous>, transform_indices = @transform_5, window_bounds = array<i64: 32, 32>}, {pipeline_mode = #tpu.pipeline_mode<synchronous>, transform_indices = @transform_6, window_bounds = array<i64: 1, 32>}, {pipeline_mode = #tpu.pipeline_mode<synchronous>, transform_indices = @transform_7, window_bounds = array<i64: 32, 16>}, {pipeline_mode = #tpu.pipeline_mode<synchronous>, transform_indices = @transform_8, window_bounds = array<i64: 32, 16>}, {pipeline_mode = #tpu.pipeline_mode<synchronous>, transform_indices = @transform_9, window_bounds = array<i64: 1, 16>}, {pipeline_mode = #tpu.pipeline_mode<synchronous>, transform_indices = @transform_10, window_bounds = array<i64: 1, 16>}, {transform_indices = @transform_11, window_bounds = array<i64: 16, 16>}, {transform_indices = @transform_12, window_bounds = array<i64: 3, 16, 16>}]} {
    %c0 = arith.constant 0 : index
    %c0_0 = arith.constant 0 : index
    %c0_1 = arith.constant 0 : index
    %0 = vector.load %arg2[%c0, %c0_0, %c0_1] : memref<3x16x32xf32, #tpu.memory_space<vmem>>, vector<3x16x32xf32>
    %1 = vector.shape_cast %0 : vector<3x16x32xf32> to vector<48x32xf32>
    %c0_2 = arith.constant 0 : index
    %c0_3 = arith.constant 0 : index
    %2 = vector.load %arg3[%c0_2, %c0_3] : memref<32x32xf32, #tpu.memory_space<vmem>>, vector<32x32xf32>
    %cst = arith.constant dense<0.000000e+00> : vector<48x32xf32>
    %3 = tpu.matmul %1, %2, %cst {dimension_numbers = #tpu.dot_dimension_numbers<[1], [0], [0], [1], [0, 0, 1, 1], [], []>} : vector<48x32xf32>, vector<32x32xf32>, vector<48x32xf32> -> vector<48x32xf32>
    %4 = vector.shape_cast %3 : vector<48x32xf32> to vector<3x16x32xf32>
    %c0_4 = arith.constant 0 : index
    %c0_5 = arith.constant 0 : index
    %5 = vector.load %arg4[%c0_4, %c0_5] : memref<32x16xf32, #tpu.memory_space<vmem>>, vector<32x16xf32>
    %cst_6 = arith.constant dense<0.000000e+00> : vector<48x16xf32>
    %6 = tpu.matmul %1, %5, %cst_6 {dimension_numbers = #tpu.dot_dimension_numbers<[1], [0], [0], [1], [0, 0, 1, 1], [], []>} : vector<48x32xf32>, vector<32x16xf32>, vector<48x16xf32> -> vector<48x16xf32>
    %7 = vector.shape_cast %6 : vector<48x16xf32> to vector<3x16x16xf32>
    %c0_7 = arith.constant 0 : index
    %c0_8 = arith.constant 0 : index
    %8 = vector.load %arg1[%c0_7, %c0_8] : memref<16x32xf32, #tpu.memory_space<vmem>>, vector<16x32xf32>
    %9 = arith.mulf %4, %4 : vector<3x16x32xf32>
    %cst_9 = arith.constant dense<0.000000e+00> : vector<16x32xf32>
    %10 = vector.multi_reduction <add>, %9, %cst_9 [0] : vector<3x16x32xf32> to vector<16x32xf32>
    %11 = math.sqrt %10 : vector<16x32xf32>
    %c0_10 = arith.constant 0 : index
    %c0_11 = arith.constant 0 : index
    %12 = vector.load %arg5[%c0_10, %c0_11] : memref<32x32xf32, #tpu.memory_space<vmem>>, vector<32x32xf32>
    %cst_12 = arith.constant dense<0.000000e+00> : vector<16x32xf32>
    %13 = tpu.matmul %8, %12, %cst_12 {dimension_numbers = #tpu.dot_dimension_numbers<[1], [0], [0], [1], [0, 0, 1, 1], [], []>} : vector<16x32xf32>, vector<32x32xf32>, vector<16x32xf32> -> vector<16x32xf32>
    %c0_13 = arith.constant 0 : index
    %c0_14 = arith.constant 0 : index
    %14 = vector.load %arg6[%c0_13, %c0_14] : memref<32x32xf32, #tpu.memory_space<vmem>>, vector<32x32xf32>
    %cst_15 = arith.constant dense<0.000000e+00> : vector<16x32xf32>
    %15 = tpu.matmul %11, %14, %cst_15 {dimension_numbers = #tpu.dot_dimension_numbers<[1], [0], [0], [1], [0, 0, 1, 1], [], []>} : vector<16x32xf32>, vector<32x32xf32>, vector<16x32xf32> -> vector<16x32xf32>
    %16 = arith.addf %13, %15 : vector<16x32xf32>
    %c0_16 = arith.constant 0 : index
    %c0_17 = arith.constant 0 : index
    %17 = vector.load %arg7[%c0_16, %c0_17] : memref<1x32xf32, #tpu.memory_space<vmem>>, vector<1x32xf32>
    %18 = vector.broadcast %17 : vector<1x32xf32> to vector<16x32xf32>
    %19 = arith.addf %16, %18 : vector<16x32xf32>
    %20 = arith.negf %19 : vector<16x32xf32>
    %21 = math.exp %20 : vector<16x32xf32>
    %cst_18 = arith.constant 1.000000e+00 : f32
    %22 = vector.broadcast %cst_18 : f32 to vector<16x32xf32>
    %23 = arith.addf %22, %21 : vector<16x32xf32>
    %24 = arith.divf %22, %23 : vector<16x32xf32>
    %25 = arith.mulf %19, %24 : vector<16x32xf32>
    %c0_19 = arith.constant 0 : index
    %c0_20 = arith.constant 0 : index
    %26 = vector.load %arg8[%c0_19, %c0_20] : memref<32x16xf32, #tpu.memory_space<vmem>>, vector<32x16xf32>
    %cst_21 = arith.constant dense<0.000000e+00> : vector<16x16xf32>
    %27 = tpu.matmul %25, %26, %cst_21 {dimension_numbers = #tpu.dot_dimension_numbers<[1], [0], [0], [1], [0, 0, 1, 1], [], []>} : vector<16x32xf32>, vector<32x16xf32>, vector<16x16xf32> -> vector<16x16xf32>
    %c0_22 = arith.constant 0 : index
    %c0_23 = arith.constant 0 : index
    %28 = vector.load %arg10[%c0_22, %c0_23] : memref<1x16xf32, #tpu.memory_space<vmem>>, vector<1x16xf32>
    %29 = vector.broadcast %28 : vector<1x16xf32> to vector<16x16xf32>
    %30 = arith.addf %27, %29 : vector<16x16xf32>
    %c0_24 = arith.constant 0 : index
    %c0_25 = arith.constant 0 : index
    %31 = vector.load %arg9[%c0_24, %c0_25] : memref<32x16xf32, #tpu.memory_space<vmem>>, vector<32x16xf32>
    %cst_26 = arith.constant dense<0.000000e+00> : vector<16x16xf32>
    %32 = tpu.matmul %25, %31, %cst_26 {dimension_numbers = #tpu.dot_dimension_numbers<[1], [0], [0], [1], [0, 0, 1, 1], [], []>} : vector<16x32xf32>, vector<32x16xf32>, vector<16x16xf32> -> vector<16x16xf32>
    %c0_27 = arith.constant 0 : index
    %c0_28 = arith.constant 0 : index
    %33 = vector.load %arg11[%c0_27, %c0_28] : memref<1x16xf32, #tpu.memory_space<vmem>>, vector<1x16xf32>
    %34 = vector.broadcast %33 : vector<1x16xf32> to vector<16x16xf32>
    %35 = arith.addf %32, %34 : vector<16x16xf32>
    %c0_29 = arith.constant 0 : index
    %c0_30 = arith.constant 0 : index
    %36 = vector.load %arg12[%c0_29, %c0_30] : memref<16x16xf32, #tpu.memory_space<vmem>>, vector<16x16xf32>
    tpu.vector_store %arg12[%c0_29, %c0_30], %30 {strides = array<i32>} : memref<16x16xf32, #tpu.memory_space<vmem>>, vector<16x16xf32>,
    %37 = vector.shape_cast %35 : vector<16x16xf32> to vector<1x16x16xf32>
    %38 = vector.broadcast %37 : vector<1x16x16xf32> to vector<3x16x16xf32>
    %39 = arith.mulf %7, %38 : vector<3x16x16xf32>
    %c0_31 = arith.constant 0 : index
    %c0_32 = arith.constant 0 : index
    %c0_33 = arith.constant 0 : index
    %40 = vector.load %arg13[%c0_31, %c0_32, %c0_33] : memref<3x16x16xf32, #tpu.memory_space<vmem>>, vector<3x16x16xf32>
    tpu.vector_store %arg13[%c0_31, %c0_32, %c0_33], %39 {strides = array<i32>} : memref<3x16x16xf32, #tpu.memory_space<vmem>>, vector<3x16x16xf32>,
    return
  }
  func.func @transform_0(%arg0: i32) -> (i32, i32) {
    %c0_i32 = arith.constant 0 : i32
    %c0_i32_0 = arith.constant 0 : i32
    return %arg0, %c0_i32 : i32, i32
  }
  func.func @transform_1(%arg0: i32) -> (i32, i32, i32) {
    %c0_i32 = arith.constant 0 : i32
    %c0_i32_0 = arith.constant 0 : i32
    %c0_i32_1 = arith.constant 0 : i32
    return %c0_i32, %arg0, %c0_i32_0 : i32, i32, i32
  }
  func.func @transform_2(%arg0: i32) -> (i32, i32) {
    %c0_i32 = arith.constant 0 : i32
    %c0_i32_0 = arith.constant 0 : i32
    %c0_i32_1 = arith.constant 0 : i32
    return %c0_i32, %c0_i32_0 : i32, i32
  }
  func.func @transform_3(%arg0: i32) -> (i32, i32) {
    %c0_i32 = arith.constant 0 : i32
    %c0_i32_0 = arith.constant 0 : i32
    %c0_i32_1 = arith.constant 0 : i32
    return %c0_i32, %c0_i32_0 : i32, i32
  }
  func.func @transform_4(%arg0: i32) -> (i32, i32) {
    %c0_i32 = arith.constant 0 : i32
    %c0_i32_0 = arith.constant 0 : i32
    %c0_i32_1 = arith.constant 0 : i32
    return %c0_i32, %c0_i32_0 : i32, i32
  }
  func.func @transform_5(%arg0: i32) -> (i32, i32) {
    %c0_i32 = arith.constant 0 : i32
    %c0_i32_0 = arith.constant 0 : i32
    %c0_i32_1 = arith.constant 0 : i32
    return %c0_i32, %c0_i32_0 : i32, i32
  }
  func.func @transform_6(%arg0: i32) -> (i32, i32) {
    %c0_i32 = arith.constant 0 : i32
    %c0_i32_0 = arith.constant 0 : i32
    %c0_i32_1 = arith.constant 0 : i32
    return %c0_i32, %c0_i32_0 : i32, i32
  }
  func.func @transform_7(%arg0: i32) -> (i32, i32) {
    %c0_i32 = arith.constant 0 : i32
    %c0_i32_0 = arith.constant 0 : i32
    %c0_i32_1 = arith.constant 0 : i32
    return %c0_i32, %c0_i32_0 : i32, i32
  }
  func.func @transform_8(%arg0: i32) -> (i32, i32) {
    %c0_i32 = arith.constant 0 : i32
    %c0_i32_0 = arith.constant 0 : i32
    %c0_i32_1 = arith.constant 0 : i32
    return %c0_i32, %c0_i32_0 : i32, i32
  }
  func.func @transform_9(%arg0: i32) -> (i32, i32) {
    %c0_i32 = arith.constant 0 : i32
    %c0_i32_0 = arith.constant 0 : i32
    %c0_i32_1 = arith.constant 0 : i32
    return %c0_i32, %c0_i32_0 : i32, i32
  }
  func.func @transform_10(%arg0: i32) -> (i32, i32) {
    %c0_i32 = arith.constant 0 : i32
    %c0_i32_0 = arith.constant 0 : i32
    %c0_i32_1 = arith.constant 0 : i32
    return %c0_i32, %c0_i32_0 : i32, i32
  }
  func.func @transform_11(%arg0: i32) -> (i32, i32) {
    %c0_i32 = arith.constant 0 : i32
    %c0_i32_0 = arith.constant 0 : i32
    return %arg0, %c0_i32 : i32, i32
  }
  func.func @transform_12(%arg0: i32) -> (i32, i32, i32) {
    %c0_i32 = arith.constant 0 : i32
    %c0_i32_0 = arith.constant 0 : i32
    %c0_i32_1 = arith.constant 0 : i32
    return %c0_i32, %arg0, %c0_i32_0 : i32, i32, i32
  }
}

</mosaic_0001>

<llo_original>
// kernel: tpu_custom_call.1
$region0: #{tpu_custom_call.1}
  #allocation0 [shape = 'u32[]', space=smem, size = 0x4, offset = 0x4, fixed_abs, tag = 'smem constant byte address 0x4 - core index']
  #allocation1 [shape = 'u32[144,128]{1,0:T(1,128)}', space=vmem, size = 0x12000, scoped, tag = 'internal scratch']
  %s0 = inlined_call_operand.hbm [shape: f32[16,32], index: 0, kind: input, shape index: {}]
  %s1 = inlined_call_operand.vmem [shape: f32[3,16,32], index: 1, kind: input, shape index: {}]
  %s2 = inlined_call_operand.vmem [shape: f32[32,32], index: 2, kind: input, shape index: {}]
  %s3 = inlined_call_operand.vmem [shape: f32[32,16], index: 3, kind: input, shape index: {}]
  %s4 = inlined_call_operand.vmem [shape: f32[32,32], index: 4, kind: input, shape index: {}]
  %s5 = inlined_call_operand.vmem [shape: f32[32,32], index: 5, kind: input, shape index: {}]
  %s6 = inlined_call_operand.vmem [shape: f32[1,32], index: 6, kind: input, shape index: {}]
  %s7 = inlined_call_operand.vmem [shape: f32[32,16], index: 7, kind: input, shape index: {}]
  %s8 = inlined_call_operand.vmem [shape: f32[32,16], index: 8, kind: input, shape index: {}]
  %s9 = inlined_call_operand.vmem [shape: f32[1,16], index: 9, kind: input, shape index: {}]
  %s10 = inlined_call_operand.vmem [shape: f32[1,16], index: 10, kind: input, shape index: {}]
  %s11 = inlined_call_operand.hbm [shape: f32[16,16], index: 11, kind: output, shape index: {0}]
  %s12 = inlined_call_operand.hbm [shape: f32[3,16,16], index: 12, kind: output, shape index: {1}]
  %13 = xla_tuple %s11, %s12
  %s14 = sld [smem:[#allocation0]]
  $region66: #{tpu_custom_call.1} parent=0
    _
  %s16 = ssub.s32 1, %s14
  %s17 = scalar_select 0, %s16, %s14
  $region1: #{tpu_custom_call.1} parent=0
    #allocation2 [shape = 'u8[8192]{0}', space=vmem, size = 0x2000, scoped, tag = 'input window, operand 0, single buffered']
    #allocation3 [shape = 's32[1]{0}', space=sflag, size = 0x4, scoped, tag = 'scoped memory for tpu_custom_call.1']
    #allocation4 [shape = 's32[1]{0}', space=sflag, size = 0x4, scoped, tag = 'scoped memory for tpu_custom_call.1']
    #allocation5 [shape = 'u8[8192]{0}', space=vmem, size = 0x2000, scoped, tag = 'output window, operand 0, single buffered']
    #allocation6 [shape = 'u8[24576]{0}', space=vmem, size = 0x6000, scoped, tag = 'output window, operand 1, single buffered']
    #allocation7 [shape = 's32[1]{0}', space=sflag, size = 0x4, scoped, tag = 'scoped memory for tpu_custom_call.1']
    %18 = vsyncpa [#allocation3], 0
    %19 = vsyncpa [#allocation4], 0
    %20 = vsyncpa [#allocation7], 0
    // Predicated region
    $region2: #{tpu_custom_call.1} parent=1 // pred_check
      _
    $region3: #{tpu_custom_call.1} parent=1 // pred_check_branch
      %22 = sbr.rel (0) target = $region5
    $region4: #{tpu_custom_call.1} parent=1 // pred_region
      %s24 = ssub.s32 256, 256
      %25 = vsyncadd [#allocation3], %s24
      %s26 = sshll.u32 [#allocation2], 4
      %s27 = int_to_ptr.vmem [resolvable:$true] %s26
      %32 = dma.hbm_to_vmem [thread:$0]  %s0, 256, %s27, [#allocation3], 128, 128, 8
    $region5: #{tpu_custom_call.1} parent=1 // pred_fallthru
      _
    // Predicated region
    $region6: #{tpu_custom_call.1} parent=1 // pred_check
      _
    $region7: #{tpu_custom_call.1} parent=1 // pred_check_branch
      %34 = sbr.rel (0) target = $region9
    $region8: #{tpu_custom_call.1} parent=1 // pred_region
      _
    $region9: #{tpu_custom_call.1} parent=1 // pred_fallthru
      _
    // Predicated region
    $region10: #{tpu_custom_call.1} parent=1 // pred_check
      _
    $region11: #{tpu_custom_call.1} parent=1 // pred_check_branch
      %36 = sbr.rel (0) target = $region13
    $region12: #{tpu_custom_call.1} parent=1 // pred_region
      _
    $region13: #{tpu_custom_call.1} parent=1 // pred_fallthru
      _
    // Predicated region
    $region14: #{tpu_custom_call.1} parent=1 // pred_check
      _
    $region15: #{tpu_custom_call.1} parent=1 // pred_check_branch
      %38 = sbr.rel (0) target = $region17
    $region16: #{tpu_custom_call.1} parent=1 // pred_region
      _
    $region17: #{tpu_custom_call.1} parent=1 // pred_fallthru
      _
    // Predicated region
    $region18: #{tpu_custom_call.1} parent=1 // pred_check
      _
    $region19: #{tpu_custom_call.1} parent=1 // pred_check_branch
      %40 = sbr.rel (0) target = $region21
    $region20: #{tpu_custom_call.1} parent=1 // pred_region
      _
    $region21: #{tpu_custom_call.1} parent=1 // pred_fallthru
      _
    // Predicated region
    $region22: #{tpu_custom_call.1} parent=1 // pred_check
      _
    $region23: #{tpu_custom_call.1} parent=1 // pred_check_branch
      %42 = sbr.rel (0) target = $region25
    $region24: #{tpu_custom_call.1} parent=1 // pred_region
      _
    $region25: #{tpu_custom_call.1} parent=1 // pred_fallthru
      _
    // Predicated region
    $region26: #{tpu_custom_call.1} parent=1 // pred_check
      _
    $region27: #{tpu_custom_call.1} parent=1 // pred_check_branch
      %44 = sbr.rel (0) target = $region29
    $region28: #{tpu_custom_call.1} parent=1 // pred_region
      _
    $region29: #{tpu_custom_call.1} parent=1 // pred_fallthru
      _
    // Predicated region
    $region30: #{tpu_custom_call.1} parent=1 // pred_check
      _
    $region31: #{tpu_custom_call.1} parent=1 // pred_check_branch
      %46 = sbr.rel (0) target = $region33
    $region32: #{tpu_custom_call.1} parent=1 // pred_region
      _
    $region33: #{tpu_custom_call.1} parent=1 // pred_fallthru
      _
    // Predicated region
    $region34: #{tpu_custom_call.1} parent=1 // pred_check
      _
    $region35: #{tpu_custom_call.1} parent=1 // pred_check_branch
      %48 = sbr.rel (0) target = $region37
    $region36: #{tpu_custom_call.1} parent=1 // pred_region
      _
    $region37: #{tpu_custom_call.1} parent=1 // pred_fallthru
      _
    // Predicated region
    $region38: #{tpu_custom_call.1} parent=1 // pred_check
      _
    $region39: #{tpu_custom_call.1} parent=1 // pred_check_branch
      %50 = sbr.rel (0) target = $region41
    $region40: #{tpu_custom_call.1} parent=1 // pred_region
      _
    $region41: #{tpu_custom_call.1} parent=1 // pred_fallthru
      _
    // Predicated region
    $region42: #{tpu_custom_call.1} parent=1 // pred_check
      _
    $region43: #{tpu_custom_call.1} parent=1 // pred_check_branch
      %52 = sbr.rel (0) target = $region45
    $region44: #{tpu_custom_call.1} parent=1 // pred_region
      _
    $region45: #{tpu_custom_call.1} parent=1 // pred_fallthru
      _
    // Predicated region
    $region46: #{tpu_custom_call.1} parent=1 // pred_check
      _
    $region47: #{tpu_custom_call.1} parent=1 // pred_check_branch
      %54 = sbr.rel (0) target = $region49
    $region48: #{tpu_custom_call.1} parent=1 // pred_region
      %55 = dma.done [#allocation3], 256
    $region49: #{tpu_custom_call.1} parent=1 // pred_fallthru
      _
    %v56 = vld [vmem:[%s1] sm:$0xff]
    %v57 = vld [vmem:[%s1 + $0x8] sm:$0xff]
    %v58 = vld [vmem:[%s1 + $0x10] sm:$0xff]
    %v59 = vld [vmem:[%s1 + $0x18] sm:$0xff]
    %v60 = vld [vmem:[%s1 + $0x20] sm:$0xff]
    %v61 = vld [vmem:[%s1 + $0x28] sm:$0xff]
    %v62 = vld [vmem:[%s2] sm:$0xff]
    %v63 = vld [vmem:[%s2 + $0x8] sm:$0xff]
    %v64 = vld [vmem:[%s2 + $0x10] sm:$0xff]
    %v65 = vld [vmem:[%s2 + $0x18] sm:$0xff]
    %vm66 = vcmask 261120
    %v68 = vsel %vm66, %v56, 0
    %v71 = vsel %vm66, %v57, 0
    %v74 = vsel %vm66, %v58, 0
    %v77 = vsel %vm66, %v59, 0
    %v80 = vsel %vm66, %v60, 0
    %v83 = vsel %vm66, %v61, 0
    %85 = vmatprep.subr.mxu0 0.0
    %86 = vmatpush1.msra.mxu0 0.0
    %87 = vmatprep.subr.mxu0 0.0
    %88 = vmatpush1.msra.mxu0 0.0
    %89 = vmatprep.subr.mxu0 0.0
    %90 = vmatpush1.msra.mxu0 0.0
    %91 = vmatprep.subr.mxu0 0.0
    %92 = vmatpush1.msra.mxu0 0.0
    %93 = vmatprep.subr.mxu0 0.0
    %94 = vmatpush1.msra.mxu0 0.0
    %95 = vmatprep.subr.mxu0 0.0
    %96 = vmatpush1.msra.mxu0 0.0
    %97 = vmatprep.subr.mxu0 0.0
    %98 = vmatpush1.msra.mxu0 0.0
    %99 = vmatprep.subr.mxu0 0.0
    %100 = vmatpush1.msra.mxu0 0.0
    %101 = vmatprep.subr.mxu0 0.0
    %102 = vmatpush1.msra.mxu0 0.0
    %103 = vmatprep.subr.mxu0 0.0
    %104 = vmatpush1.msra.mxu0 0.0
    %105 = vmatprep.subr.mxu0 0.0
    %106 = vmatpush1.msra.mxu0 0.0
    %107 = vmatprep.subr.mxu0 0.0
    %108 = vmatpush1.msra.mxu0 0.0
    %109 = vmatprep.subr.mxu0 0.0
    %110 = vmatpush1.msra.mxu0 %v65
    %111 = vmatprep.subr.mxu0 0.0
    %112 = vmatpush1.msra.mxu0 %v64
    %113 = vmatprep.subr.mxu0 0.0
    %114 = vmatpush1.msra.mxu0 %v63
    %115 = vmatprep.subr.mxu0 0.0
    %116 = vmatpush1.msra.mxu0 %v62
    %117 = vmatprep.subr.mxu0 0.0
    %118 = vmatpush2.msra.mxu0 0.0
    %119 = vmatprep.subr.mxu0 0.0
    %120 = vmatpush2.msra.mxu0 0.0
    %121 = vmatprep.subr.mxu0 0.0
    %122 = vmatpush2.msra.mxu0 0.0
    %123 = vmatprep.subr.mxu0 0.0
    %124 = vmatpush2.msra.mxu0 0.0
    %125 = vmatprep.subr.mxu0 0.0
    %126 = vmatpush2.msra.mxu0 0.0
    %127 = vmatprep.subr.mxu0 0.0
    %128 = vmatpush2.msra.mxu0 0.0
    %129 = vmatprep.subr.mxu0 0.0
    %130 = vmatpush2.msra.mxu0 0.0
    %131 = vmatprep.subr.mxu0 0.0
    %132 = vmatpush2.msra.mxu0 0.0
    %133 = vmatprep.subr.mxu0 0.0
    %134 = vmatpush2.msra.mxu0 0.0
    %135 = vmatprep.subr.mxu0 0.0
    %136 = vmatpush2.msra.mxu0 0.0
    %137 = vmatprep.subr.mxu0 0.0
    %138 = vmatpush2.msra.mxu0 0.0
    %139 = vmatprep.subr.mxu0 0.0
    %140 = vmatpush2.msra.mxu0 0.0
    %141 = vmatprep.subr.mxu0 0.0
    %142 = vmatpush2.msra.mxu0 0.0
    %143 = vmatprep.subr.mxu0 0.0
    %144 = vmatpush2.msra.mxu0 0.0
    %145 = vmatprep.subr.mxu0 0.0
    %146 = vmatpush2.msra.mxu0 0.0
    %147 = vmatprep.subr.mxu0 0.0
    %148 = vmatpush2.msra.mxu0 0.0
    %149 = vmatprep.mubr.f32.mxu0 0.0
    %150 = vmatmul.mubr.f32.gmra.mxu0 %v68
    %v151 = vpop.f32.mrf.mxu0
    %v152 = vadd.f32 0.0, %v151
    %v153 = vpop.f32.mrf.mxu0
    %154 = vmatprep.mubr.f32.mxu0 0.0
    %155 = vmatmul.mubr.f32.gmra.mxu0 %v71
    %v156 = vpop.f32.mrf.mxu0
    %v157 = vadd.f32 0.0, %v156
    %v158 = vpop.f32.mrf.mxu0
    %159 = vmatprep.mubr.f32.mxu0 0.0
    %160 = vmatmul.mubr.f32.gmra.mxu0 %v74
    %v161 = vpop.f32.mrf.mxu0
    %v162 = vadd.f32 0.0, %v161
    %v163 = vpop.f32.mrf.mxu0
    %164 = vmatprep.mubr.f32.mxu0 0.0
    %165 = vmatmul.mubr.f32.gmra.mxu0 %v77
    %v166 = vpop.f32.mrf.mxu0
    %v167 = vadd.f32 0.0, %v166
    %v168 = vpop.f32.mrf.mxu0
    %169 = vmatprep.mubr.f32.mxu0 0.0
    %170 = vmatmul.mubr.f32.gmra.mxu0 %v80
    %v171 = vpop.f32.mrf.mxu0
    %v172 = vadd.f32 0.0, %v171
    %v173 = vpop.f32.mrf.mxu0
    %174 = vmatprep.mubr.f32.mxu0 0.0
    %175 = vmatmul.mubr.f32.gmra.mxu0 %v83
    %v176 = vpop.f32.mrf.mxu0
    %v177 = vadd.f32 0.0, %v176
    %v178 = vpop.f32.mrf.mxu0
    %179 = vdwg.mxu0
    %v180 = vld [vmem:[%s3] sm:$0xff]
    %v181 = vld [vmem:[%s3 + $0x8] sm:$0xff]
    %v182 = vld [vmem:[%s3 + $0x10] sm:$0xff]
    %v183 = vld [vmem:[%s3 + $0x18] sm:$0xff]
    %184 = vmatprep.subr.mxu0 0.0
    %185 = vmatpush1.msra.mxu0 0.0
    %186 = vmatprep.subr.mxu0 0.0
    %187 = vmatpush1.msra.mxu0 0.0
    %188 = vmatprep.subr.mxu0 0.0
    %189 = vmatpush1.msra.mxu0 0.0
    %190 = vmatprep.subr.mxu0 0.0
    %191 = vmatpush1.msra.mxu0 0.0
    %192 = vmatprep.subr.mxu0 0.0
    %193 = vmatpush1.msra.mxu0 0.0
    %194 = vmatprep.subr.mxu0 0.0
    %195 = vmatpush1.msra.mxu0 0.0
    %196 = vmatprep.subr.mxu0 0.0
    %197 = vmatpush1.msra.mxu0 0.0
    %198 = vmatprep.subr.mxu0 0.0
    %199 = vmatpush1.msra.mxu0 0.0
    %200 = vmatprep.subr.mxu0 0.0
    %201 = vmatpush1.msra.mxu0 0.0
    %202 = vmatprep.subr.mxu0 0.0
    %203 = vmatpush1.msra.mxu0 0.0
    %204 = vmatprep.subr.mxu0 0.0
    %205 = vmatpush1.msra.mxu0 0.0
    %206 = vmatprep.subr.mxu0 0.0
    %207 = vmatpush1.msra.mxu0 0.0
    %208 = vmatprep.subr.mxu0 0.0
    %209 = vmatpush1.msra.mxu0 %v183
    %210 = vmatprep.subr.mxu0 0.0
    %211 = vmatpush1.msra.mxu0 %v182
    %212 = vmatprep.subr.mxu0 0.0
    %213 = vmatpush1.msra.mxu0 %v181
    %214 = vmatprep.subr.mxu0 0.0
    %215 = vmatpush1.msra.mxu0 %v180
    %216 = vmatprep.subr.mxu0 0.0
    %217 = vmatpush2.msra.mxu0 0.0
    %218 = vmatprep.subr.mxu0 0.0
    %219 = vmatpush2.msra.mxu0 0.0
    %220 = vmatprep.subr.mxu0 0.0
    %221 = vmatpush2.msra.mxu0 0.0
    %222 = vmatprep.subr.mxu0 0.0
    %223 = vmatpush2.msra.mxu0 0.0
    %224 = vmatprep.subr.mxu0 0.0
    %225 = vmatpush2.msra.mxu0 0.0
    %226 = vmatprep.subr.mxu0 0.0
    %227 = vmatpush2.msra.mxu0 0.0
    %228 = vmatprep.subr.mxu0 0.0
    %229 = vmatpush2.msra.mxu0 0.0
    %230 = vmatprep.subr.mxu0 0.0
    %231 = vmatpush2.msra.mxu0 0.0
    %232 = vmatprep.subr.mxu0 0.0
    %233 = vmatpush2.msra.mxu0 0.0
    %234 = vmatprep.subr.mxu0 0.0
    %235 = vmatpush2.msra.mxu0 0.0
    %236 = vmatprep.subr.mxu0 0.0
    %237 = vmatpush2.msra.mxu0 0.0
    %238 = vmatprep.subr.mxu0 0.0
    %239 = vmatpush2.msra.mxu0 0.0
    %240 = vmatprep.subr.mxu0 0.0
    %241 = vmatpush2.msra.mxu0 0.0
    %242 = vmatprep.subr.mxu0 0.0
    %243 = vmatpush2.msra.mxu0 0.0
    %244 = vmatprep.subr.mxu0 0.0
    %245 = vmatpush2.msra.mxu0 0.0
    %246 = vmatprep.subr.mxu0 0.0
    %247 = vmatpush2.msra.mxu0 0.0
    %248 = vmatprep.mubr.f32.mxu0 0.0
    %249 = vmatmul.mubr.f32.gmra.mxu0 %v68
    %v250 = vpop.f32.mrf.mxu0
    %v251 = vadd.f32 0.0, %v250
    %v252 = vpop.f32.mrf.mxu0
    %253 = vmatprep.mubr.f32.mxu0 0.0
    %254 = vmatmul.mubr.f32.gmra.mxu0 %v71
    %v255 = vpop.f32.mrf.mxu0
    %v256 = vadd.f32 0.0, %v255
    %v257 = vpop.f32.mrf.mxu0
    %258 = vmatprep.mubr.f32.mxu0 0.0
    %259 = vmatmul.mubr.f32.gmra.mxu0 %v74
    %v260 = vpop.f32.mrf.mxu0
    %v261 = vadd.f32 0.0, %v260
    %v262 = vpop.f32.mrf.mxu0
    %263 = vmatprep.mubr.f32.mxu0 0.0
    %264 = vmatmul.mubr.f32.gmra.mxu0 %v77
    %v265 = vpop.f32.mrf.mxu0
    %v266 = vadd.f32 0.0, %v265
    %v267 = vpop.f32.mrf.mxu0
    %268 = vmatprep.mubr.f32.mxu0 0.0
    %269 = vmatmul.mubr.f32.gmra.mxu0 %v80
    %v270 = vpop.f32.mrf.mxu0
    %v271 = vadd.f32 0.0, %v270
    %v272 = vpop.f32.mrf.mxu0
    %273 = vmatprep.mubr.f32.mxu0 0.0
    %274 = vmatmul.mubr.f32.gmra.mxu0 %v83
    %v275 = vpop.f32.mrf.mxu0
    %v276 = vadd.f32 0.0, %v275
    %v277 = vpop.f32.mrf.mxu0
    %278 = vdwg.mxu0
    %v279 = vld [vmem:[#allocation2] sm:$0xff]
    %v280 = vld [vmem:[#allocation2 + $0x8] sm:$0xff]
    %v281 = vmul.f32 %v152, %v152
    %v282 = vmul.f32 %v157, %v157
    %v283 = vmul.f32 %v162, %v162
    %v284 = vmul.f32 %v167, %v167
    %v285 = vmul.f32 %v172, %v172
    %v286 = vmul.f32 %v177, %v177
    %v287 = vsel %vm66, %v281, 0.0
    %v288 = vsel %vm66, %v283, 0.0
    %v289 = vadd.f32 %v287, %v288
    %v290 = vsel %vm66, %v285, 0.0
    %v291 = vadd.f32 %v289, %v290
    %v292 = vsel %vm66, %v282, 0.0
    %v293 = vsel %vm66, %v284, 0.0
    %v294 = vadd.f32 %v292, %v293
    %v295 = vsel %vm66, %v286, 0.0
    %v296 = vadd.f32 %v294, %v295
    %v297 = vrsqrt.pop %v291
    %v298 = vmul.f32 %v291, %v297
    %vm299 = vcmp.eq.f32.partialorder %v291, inf
    %v300 = vsel %vm299, %v291, %v298
    %vm301 = vcmp.eq.f32.partialorder %v291, 0.0
    %v302 = vand.u32 %v291, 2147483648
    %v303 = vsel %vm301, %v302, %v300
    %v304 = vrsqrt.pop %v296
    %v305 = vmul.f32 %v296, %v304
    %vm306 = vcmp.eq.f32.partialorder %v296, inf
    %v307 = vsel %vm306, %v296, %v305
    %vm308 = vcmp.eq.f32.partialorder %v296, 0.0
    %v309 = vand.u32 %v296, 2147483648
    %v310 = vsel %vm308, %v309, %v307
    %v311 = vld [vmem:[%s4] sm:$0xff]
    %v312 = vld [vmem:[%s4 + $0x8] sm:$0xff]
    %v313 = vld [vmem:[%s4 + $0x10] sm:$0xff]
    %v314 = vld [vmem:[%s4 + $0x18] sm:$0xff]
    %v315 = vld [vmem:[%s5] sm:$0xff]
    %v316 = vld [vmem:[%s5 + $0x8] sm:$0xff]
    %v317 = vld [vmem:[%s5 + $0x10] sm:$0xff]
    %v318 = vld [vmem:[%s5 + $0x18] sm:$0xff]
    %v320 = vsel %vm66, %v303, 0
    %v323 = vsel %vm66, %v310, 0
    %325 = vmatprep.subr.mxu0 0.0
    %326 = vmatpush1.msra.mxu0 0.0
    %327 = vmatprep.subr.mxu0 0.0
    %328 = vmatpush1.msra.mxu0 0.0
    %329 = vmatprep.subr.mxu0 0.0
    %330 = vmatpush1.msra.mxu0 0.0
    %331 = vmatprep.subr.mxu0 0.0
    %332 = vmatpush1.msra.mxu0 0.0
    %333 = vmatprep.subr.mxu0 0.0
    %334 = vmatpush1.msra.mxu0 0.0
    %335 = vmatprep.subr.mxu0 0.0
    %336 = vmatpush1.msra.mxu0 0.0
    %337 = vmatprep.subr.mxu0 0.0
    %338 = vmatpush1.msra.mxu0 0.0
    %339 = vmatprep.subr.mxu0 0.0
    %340 = vmatpush1.msra.mxu0 0.0
    %341 = vmatprep.subr.mxu0 0.0
    %342 = vmatpush1.msra.mxu0 0.0
    %343 = vmatprep.subr.mxu0 0.0
    %344 = vmatpush1.msra.mxu0 0.0
    %345 = vmatprep.subr.mxu0 0.0
    %346 = vmatpush1.msra.mxu0 0.0
    %347 = vmatprep.subr.mxu0 0.0
    %348 = vmatpush1.msra.mxu0 0.0
    %349 = vmatprep.subr.mxu0 0.0
    %350 = vmatpush1.msra.mxu0 %v318
    %351 = vmatprep.subr.mxu0 0.0
    %352 = vmatpush1.msra.mxu0 %v317
    %353 = vmatprep.subr.mxu0 0.0
    %354 = vmatpush1.msra.mxu0 %v316
    %355 = vmatprep.subr.mxu0 0.0
    %356 = vmatpush1.msra.mxu0 %v315
    %357 = vmatprep.subr.mxu0 0.0
    %358 = vmatpush2.msra.mxu0 0.0
    %359 = vmatprep.subr.mxu0 0.0
    %360 = vmatpush2.msra.mxu0 0.0
    %361 = vmatprep.subr.mxu0 0.0
    %362 = vmatpush2.msra.mxu0 0.0
    %363 = vmatprep.subr.mxu0 0.0
    %364 = vmatpush2.msra.mxu0 0.0
    %365 = vmatprep.subr.mxu0 0.0
    %366 = vmatpush2.msra.mxu0 0.0
    %367 = vmatprep.subr.mxu0 0.0
    %368 = vmatpush2.msra.mxu0 0.0
    %369 = vmatprep.subr.mxu0 0.0
    %370 = vmatpush2.msra.mxu0 0.0
    %371 = vmatprep.subr.mxu0 0.0
    %372 = vmatpush2.msra.mxu0 0.0
    %373 = vmatprep.subr.mxu0 0.0
    %374 = vmatpush2.msra.mxu0 0.0
    %375 = vmatprep.subr.mxu0 0.0
    %376 = vmatpush2.msra.mxu0 0.0
    %377 = vmatprep.subr.mxu0 0.0
    %378 = vmatpush2.msra.mxu0 0.0
    %379 = vmatprep.subr.mxu0 0.0
    %380 = vmatpush2.msra.mxu0 0.0
    %381 = vmatprep.subr.mxu0 0.0
    %382 = vmatpush2.msra.mxu0 0.0
    %383 = vmatprep.subr.mxu0 0.0
    %384 = vmatpush2.msra.mxu0 0.0
    %385 = vmatprep.subr.mxu0 0.0
    %386 = vmatpush2.msra.mxu0 0.0
    %387 = vmatprep.subr.mxu0 0.0
    %388 = vmatpush2.msra.mxu0 0.0
    %389 = vmatprep.mubr.f32.mxu0 0.0
    %390 = vmatmul.mubr.f32.gmra.mxu0 %v320
    %v391 = vpop.f32.mrf.mxu0
    %v392 = vadd.f32 0.0, %v391
    %v393 = vpop.f32.mrf.mxu0
    %394 = vmatprep.mubr.f32.mxu0 0.0
    %395 = vmatmul.mubr.f32.gmra.mxu0 %v323
    %v396 = vpop.f32.mrf.mxu0
    %v397 = vadd.f32 0.0, %v396
    %v398 = vpop.f32.mrf.mxu0
    %399 = vdwg.mxu0
    %v401 = vsel %vm66, %v279, 0
    %v404 = vsel %vm66, %v280, 0
    %406 = vmatprep.subr.mxu0 0.0
    %407 = vmatpush1.msra.mxu0 0.0
    %408 = vmatprep.subr.mxu0 0.0
    %409 = vmatpush1.msra.mxu0 0.0
    %410 = vmatprep.subr.mxu0 0.0
    %411 = vmatpush1.msra.mxu0 0.0
    %412 = vmatprep.subr.mxu0 0.0
    %413 = vmatpush1.msra.mxu0 0.0
    %414 = vmatprep.subr.mxu0 0.0
    %415 = vmatpush1.msra.mxu0 0.0
    %416 = vmatprep.subr.mxu0 0.0
    %417 = vmatpush1.msra.mxu0 0.0
    %418 = vmatprep.subr.mxu0 0.0
    %419 = vmatpush1.msra.mxu0 0.0
    %420 = vmatprep.subr.mxu0 0.0
    %421 = vmatpush1.msra.mxu0 0.0
    %422 = vmatprep.subr.mxu0 0.0
    %423 = vmatpush1.msra.mxu0 0.0
    %424 = vmatprep.subr.mxu0 0.0
    %425 = vmatpush1.msra.mxu0 0.0
    %426 = vmatprep.subr.mxu0 0.0
    %427 = vmatpush1.msra.mxu0 0.0
    %428 = vmatprep.subr.mxu0 0.0
    %429 = vmatpush1.msra.mxu0 0.0
    %430 = vmatprep.subr.mxu0 0.0
    %431 = vmatpush1.msra.mxu0 %v314
    %432 = vmatprep.subr.mxu0 0.0
    %433 = vmatpush1.msra.mxu0 %v313
    %434 = vmatprep.subr.mxu0 0.0
    %435 = vmatpush1.msra.mxu0 %v312
    %436 = vmatprep.subr.mxu0 0.0
    %437 = vmatpush1.msra.mxu0 %v311
    %438 = vmatprep.subr.mxu0 0.0
    %439 = vmatpush2.msra.mxu0 0.0
    %440 = vmatprep.subr.mxu0 0.0
    %441 = vmatpush2.msra.mxu0 0.0
    %442 = vmatprep.subr.mxu0 0.0
    %443 = vmatpush2.msra.mxu0 0.0
    %444 = vmatprep.subr.mxu0 0.0
    %445 = vmatpush2.msra.mxu0 0.0
    %446 = vmatprep.subr.mxu0 0.0
    %447 = vmatpush2.msra.mxu0 0.0
    %448 = vmatprep.subr.mxu0 0.0
    %449 = vmatpush2.msra.mxu0 0.0
    %450 = vmatprep.subr.mxu0 0.0
    %451 = vmatpush2.msra.mxu0 0.0
    %452 = vmatprep.subr.mxu0 0.0
    %453 = vmatpush2.msra.mxu0 0.0
    %454 = vmatprep.subr.mxu0 0.0
    %455 = vmatpush2.msra.mxu0 0.0
    %456 = vmatprep.subr.mxu0 0.0
    %457 = vmatpush2.msra.mxu0 0.0
    %458 = vmatprep.subr.mxu0 0.0
    %459 = vmatpush2.msra.mxu0 0.0
    %460 = vmatprep.subr.mxu0 0.0
    %461 = vmatpush2.msra.mxu0 0.0
    %462 = vmatprep.subr.mxu0 0.0
    %463 = vmatpush2.msra.mxu0 0.0
    %464 = vmatprep.subr.mxu0 0.0
    %465 = vmatpush2.msra.mxu0 0.0
    %466 = vmatprep.subr.mxu0 0.0
    %467 = vmatpush2.msra.mxu0 0.0
    %468 = vmatprep.subr.mxu0 0.0
    %469 = vmatpush2.msra.mxu0 0.0
    %470 = vmatprep.mubr.f32.mxu0 0.0
    %471 = vmatmul.mubr.f32.gmra.mxu0 %v401
    %v472 = vpop.f32.mrf.mxu0
    %v473 = vadd.f32 %v392, %v472
    %v474 = vpop.f32.mrf.mxu0
    %475 = vmatprep.mubr.f32.mxu0 0.0
    %476 = vmatmul.mubr.f32.gmra.mxu0 %v404
    %v477 = vpop.f32.mrf.mxu0
    %v478 = vadd.f32 %v397, %v477
    %v479 = vpop.f32.mrf.mxu0
    %480 = vdwg.mxu0
    %v481 = vld [vmem:[%s6] sm:$0x1]
    %v483 = vlaneseq
    %v484 = vshrl.u32 %v483, 7
    %v485 = vsub.s32 0, %v484
    %v486 = vrot.slane %v481, %v485
    %v488 = vadd.f32 %v473, %v486
    %v489 = vadd.f32 %v478, %v486
    %v490 = vxor.u32 %v488, 2147483648
    %v491 = vxor.u32 %v489, 2147483648
    %v492 = vmul.f32 %v490, 1.442695
    %v493 = vpow.pop %v492
    %v494 = vmul.f32 %v491, 1.442695
    %v495 = vpow.pop %v494
    %v496 = vadd.f32 %v493, 1.0
    %v497 = vadd.f32 %v495, 1.0
    %v498 = vrcp.pop %v496
    %v499 = vmul.f32 1.0, %v498
    %v500 = vrcp.pop %v497
    %v501 = vmul.f32 1.0, %v500
    %v502 = vmul.f32 %v488, %v499
    %v503 = vmul.f32 %v489, %v501
    %v504 = vld [vmem:[%s7] sm:$0xff]
    %v505 = vld [vmem:[%s7 + $0x8] sm:$0xff]
    %v506 = vld [vmem:[%s7 + $0x10] sm:$0xff]
    %v507 = vld [vmem:[%s7 + $0x18] sm:$0xff]
    %v508 = vld [vmem:[%s9] sm:$0x1]
    %v510 = vlaneseq
    %v511 = vshrl.u32 %v510, 7
    %v512 = vsub.s32 0, %v511
    %v513 = vrot.slane %v508, %v512
    %v516 = vsel %vm66, %v502, 0
    %v519 = vsel %vm66, %v503, 0
    %521 = vmatprep.subr.mxu0 0.0
    %522 = vmatpush1.msra.mxu0 0.0
    %523 = vmatprep.subr.mxu0 0.0
    %524 = vmatpush1.msra.mxu0 0.0
    %525 = vmatprep.subr.mxu0 0.0
    %526 = vmatpush1.msra.mxu0 0.0
    %527 = vmatprep.subr.mxu0 0.0
    %528 = vmatpush1.msra.mxu0 0.0
    %529 = vmatprep.subr.mxu0 0.0
    %530 = vmatpush1.msra.mxu0 0.0
    %531 = vmatprep.subr.mxu0 0.0
    %532 = vmatpush1.msra.mxu0 0.0
    %533 = vmatprep.subr.mxu0 0.0
    %534 = vmatpush1.msra.mxu0 0.0
    %535 = vmatprep.subr.mxu0 0.0
    %536 = vmatpush1.msra.mxu0 0.0
    %537 = vmatprep.subr.mxu0 0.0
    %538 = vmatpush1.msra.mxu0 0.0
    %539 = vmatprep.subr.mxu0 0.0
    %540 = vmatpush1.msra.mxu0 0.0
    %541 = vmatprep.subr.mxu0 0.0
    %542 = vmatpush1.msra.mxu0 0.0
    %543 = vmatprep.subr.mxu0 0.0
    %544 = vmatpush1.msra.mxu0 0.0
    %545 = vmatprep.subr.mxu0 0.0
    %546 = vmatpush1.msra.mxu0 %v507
    %547 = vmatprep.subr.mxu0 0.0
    %548 = vmatpush1.msra.mxu0 %v506
    %549 = vmatprep.subr.mxu0 0.0
    %550 = vmatpush1.msra.mxu0 %v505
    %551 = vmatprep.subr.mxu0 0.0
    %552 = vmatpush1.msra.mxu0 %v504
    %553 = vmatprep.subr.mxu0 0.0
    %554 = vmatpush2.msra.mxu0 0.0
    %555 = vmatprep.subr.mxu0 0.0
    %556 = vmatpush2.msra.mxu0 0.0
    %557 = vmatprep.subr.mxu0 0.0
    %558 = vmatpush2.msra.mxu0 0.0
    %559 = vmatprep.subr.mxu0 0.0
    %560 = vmatpush2.msra.mxu0 0.0
    %561 = vmatprep.subr.mxu0 0.0
    %562 = vmatpush2.msra.mxu0 0.0
    %563 = vmatprep.subr.mxu0 0.0
    %564 = vmatpush2.msra.mxu0 0.0
    %565 = vmatprep.subr.mxu0 0.0
    %566 = vmatpush2.msra.mxu0 0.0
    %567 = vmatprep.subr.mxu0 0.0
    %568 = vmatpush2.msra.mxu0 0.0
    %569 = vmatprep.subr.mxu0 0.0
    %570 = vmatpush2.msra.mxu0 0.0
    %571 = vmatprep.subr.mxu0 0.0
    %572 = vmatpush2.msra.mxu0 0.0
    %573 = vmatprep.subr.mxu0 0.0
    %574 = vmatpush2.msra.mxu0 0.0
    %575 = vmatprep.subr.mxu0 0.0
    %576 = vmatpush2.msra.mxu0 0.0
    %577 = vmatprep.subr.mxu0 0.0
    %578 = vmatpush2.msra.mxu0 0.0
    %579 = vmatprep.subr.mxu0 0.0
    %580 = vmatpush2.msra.mxu0 0.0
    %581 = vmatprep.subr.mxu0 0.0
    %582 = vmatpush2.msra.mxu0 0.0
    %583 = vmatprep.subr.mxu0 0.0
    %584 = vmatpush2.msra.mxu0 0.0
    %585 = vmatprep.mubr.f32.mxu0 0.0
    %586 = vmatmul.mubr.f32.gmra.mxu0 %v516
    %v587 = vpop.f32.mrf.mxu0
    %v588 = vadd.f32 %v513, %v587
    %v589 = vpop.f32.mrf.mxu0
    %590 = vmatprep.mubr.f32.mxu0 0.0
    %591 = vmatmul.mubr.f32.gmra.mxu0 %v519
    %v592 = vpop.f32.mrf.mxu0
    %v593 = vadd.f32 %v513, %v592
    %v594 = vpop.f32.mrf.mxu0
    %595 = vdwg.mxu0
    %v596 = vld [vmem:[%s8] sm:$0xff]
    %v597 = vld [vmem:[%s8 + $0x8] sm:$0xff]
    %v598 = vld [vmem:[%s8 + $0x10] sm:$0xff]
    %v599 = vld [vmem:[%s8 + $0x18] sm:$0xff]
    %v600 = vld [vmem:[%s10] sm:$0x1]
    %v602 = vlaneseq
    %v603 = vshrl.u32 %v602, 7
    %v604 = vsub.s32 0, %v603
    %v605 = vrot.slane %v600, %v604
    %607 = vmatprep.subr.mxu0 0.0
    %608 = vmatpush1.msra.mxu0 0.0
    %609 = vmatprep.subr.mxu0 0.0
    %610 = vmatpush1.msra.mxu0 0.0
    %611 = vmatprep.subr.mxu0 0.0
    %612 = vmatpush1.msra.mxu0 0.0
    %613 = vmatprep.subr.mxu0 0.0
    %614 = vmatpush1.msra.mxu0 0.0
    %615 = vmatprep.subr.mxu0 0.0
    %616 = vmatpush1.msra.mxu0 0.0
    %617 = vmatprep.subr.mxu0 0.0
    %618 = vmatpush1.msra.mxu0 0.0
    %619 = vmatprep.subr.mxu0 0.0
    %620 = vmatpush1.msra.mxu0 0.0
    %621 = vmatprep.subr.mxu0 0.0
    %622 = vmatpush1.msra.mxu0 0.0
    %623 = vmatprep.subr.mxu0 0.0
    %624 = vmatpush1.msra.mxu0 0.0
    %625 = vmatprep.subr.mxu0 0.0
    %626 = vmatpush1.msra.mxu0 0.0
    %627 = vmatprep.subr.mxu0 0.0
    %628 = vmatpush1.msra.mxu0 0.0
    %629 = vmatprep.subr.mxu0 0.0
    %630 = vmatpush1.msra.mxu0 0.0
    %631 = vmatprep.subr.mxu0 0.0
    %632 = vmatpush1.msra.mxu0 %v599
    %633 = vmatprep.subr.mxu0 0.0
    %634 = vmatpush1.msra.mxu0 %v598
    %635 = vmatprep.subr.mxu0 0.0
    %636 = vmatpush1.msra.mxu0 %v597
    %637 = vmatprep.subr.mxu0 0.0
    %638 = vmatpush1.msra.mxu0 %v596
    %639 = vmatprep.subr.mxu0 0.0
    %640 = vmatpush2.msra.mxu0 0.0
    %641 = vmatprep.subr.mxu0 0.0
    %642 = vmatpush2.msra.mxu0 0.0
    %643 = vmatprep.subr.mxu0 0.0
    %644 = vmatpush2.msra.mxu0 0.0
    %645 = vmatprep.subr.mxu0 0.0
    %646 = vmatpush2.msra.mxu0 0.0
    %647 = vmatprep.subr.mxu0 0.0
    %648 = vmatpush2.msra.mxu0 0.0
    %649 = vmatprep.subr.mxu0 0.0
    %650 = vmatpush2.msra.mxu0 0.0
    %651 = vmatprep.subr.mxu0 0.0
    %652 = vmatpush2.msra.mxu0 0.0
    %653 = vmatprep.subr.mxu0 0.0
    %654 = vmatpush2.msra.mxu0 0.0
    %655 = vmatprep.subr.mxu0 0.0
    %656 = vmatpush2.msra.mxu0 0.0
    %657 = vmatprep.subr.mxu0 0.0
    %658 = vmatpush2.msra.mxu0 0.0
    %659 = vmatprep.subr.mxu0 0.0
    %660 = vmatpush2.msra.mxu0 0.0
    %661 = vmatprep.subr.mxu0 0.0
    %662 = vmatpush2.msra.mxu0 0.0
    %663 = vmatprep.subr.mxu0 0.0
    %664 = vmatpush2.msra.mxu0 0.0
    %665 = vmatprep.subr.mxu0 0.0
    %666 = vmatpush2.msra.mxu0 0.0
    %667 = vmatprep.subr.mxu0 0.0
    %668 = vmatpush2.msra.mxu0 0.0
    %669 = vmatprep.subr.mxu0 0.0
    %670 = vmatpush2.msra.mxu0 0.0
    %671 = vmatprep.mubr.f32.mxu0 0.0
    %672 = vmatmul.mubr.f32.gmra.mxu0 %v516
    %v673 = vpop.f32.mrf.mxu0
    %v674 = vadd.f32 %v605, %v673
    %v675 = vpop.f32.mrf.mxu0
    %676 = vmatprep.mubr.f32.mxu0 0.0
    %677 = vmatmul.mubr.f32.gmra.mxu0 %v519
    %v678 = vpop.f32.mrf.mxu0
    %v679 = vadd.f32 %v605, %v678
    %v680 = vpop.f32.mrf.mxu0
    %681 = vdwg.mxu0
    %vm682 = vcmask 130048
    %683 = vst.msk [vmem:[#allocation5] sm:$0xff] %vm682, %v588
    %684 = vst.msk [vmem:[#allocation5 + $0x8] sm:$0xff] %vm682, %v593
    %v685 = vmul.f32 %v251, %v674
    %v686 = vmul.f32 %v256, %v679
    %v687 = vmul.f32 %v261, %v674
    %v688 = vmul.f32 %v266, %v679
    %v689 = vmul.f32 %v271, %v674
    %v690 = vmul.f32 %v276, %v679
    %691 = vst.msk [vmem:[#allocation6] sm:$0xff] %vm682, %v685
    %692 = vst.msk [vmem:[#allocation6 + $0x8] sm:$0xff] %vm682, %v686
    %693 = vst.msk [vmem:[#allocation6 + $0x10] sm:$0xff] %vm682, %v687
    %694 = vst.msk [vmem:[#allocation6 + $0x18] sm:$0xff] %vm682, %v688
    %695 = vst.msk [vmem:[#allocation6 + $0x20] sm:$0xff] %vm682, %v689
    %696 = vst.msk [vmem:[#allocation6 + $0x28] sm:$0xff] %vm682, %v690
    // Predicated region
    $region50: #{tpu_custom_call.1} parent=1 // pred_check
      _
    $region51: #{tpu_custom_call.1} parent=1 // pred_check_branch
      %698 = sbr.rel (0) target = $region53
    $region52: #{tpu_custom_call.1} parent=1 // pred_region
      %s700 = ssub.s32 256, 256
      %701 = vsyncadd [#allocation4], %s700
      %s702 = sshll.u32 [#allocation5], 4
      %s703 = int_to_ptr.vmem [resolvable:$true] %s702
      %708 = dma.vmem_to_hbm [thread:$0]  %s703, 256, %s11, [#allocation4], 128, 128, 8
    $region53: #{tpu_custom_call.1} parent=1 // pred_fallthru
      _
    // Predicated region
    $region54: #{tpu_custom_call.1} parent=1 // pred_check
      _
    $region55: #{tpu_custom_call.1} parent=1 // pred_check_branch
      %710 = sbr.rel (0) target = $region57
    $region56: #{tpu_custom_call.1} parent=1 // pred_region
      %s712 = ssub.s32 768, 768
      %713 = vsyncadd [#allocation7], %s712
      %s714 = sshll.u32 [#allocation6], 4
      %s715 = int_to_ptr.vmem [resolvable:$true] %s714
      %720 = dma.vmem_to_hbm [thread:$0]  %s715, 768, %s12, [#allocation7], 128, 128, 8
    $region57: #{tpu_custom_call.1} parent=1 // pred_fallthru
      _
    // Predicated region
    $region58: #{tpu_custom_call.1} parent=1 // pred_check
      _
    $region59: #{tpu_custom_call.1} parent=1 // pred_check_branch
      %722 = sbr.rel (0) target = $region61
    $region60: #{tpu_custom_call.1} parent=1 // pred_region
      %723 = dma.done [#allocation4], 256
    $region61: #{tpu_custom_call.1} parent=1 // pred_fallthru
      _
    // Predicated region
    $region62: #{tpu_custom_call.1} parent=1 // pred_check
      _
    $region63: #{tpu_custom_call.1} parent=1 // pred_check_branch
      %725 = sbr.rel (0) target = $region65
    $region64: #{tpu_custom_call.1} parent=1 // pred_region
      %726 = dma.done [#allocation7], 768
    $region65: #{tpu_custom_call.1} parent=1 // pred_fallthru
      _
    %727 = vsyncpa [#allocation3], 1
    %728 = vsyncpa [#allocation4], 1
    %729 = vsyncpa [#allocation7], 1

</llo_original>
